<compile_context>
chip_gen: v7x
topology: tpu7x:2x2x1
jax: 0.10.0
libtpu: 0.0.40
codegen_flags: <defaults>
</compile_context>

<pallas_src>
import math

import jax
import jax.numpy as jnp
from jax.experimental import pallas as pl
from jax.experimental.pallas import tpu as pltpu


def _round_up(x, m):
    return ((x + m - 1) // m) * m


def fuse_kernel(a_ref, b_ref, wa_ref, wb_ref, bias_ref, o_ref):
    # a/b tiles: (TB, Dp) in native dtype; cast to f32 only for the gate math.
    a = a_ref[...].astype(jnp.float32)
    b = b_ref[...].astype(jnp.float32)
    # Gate logit == cat([a, b], 1) @ W.T + bias, with the concat fused away.
    # VPU multiply + XLU lane reduction (VALU/XLU slots, MXU untouched).
    s = a * wa_ref[...] + b * wb_ref[...]                    # (TB, Dp) f32
    logit = jnp.sum(s, axis=-1, keepdims=True) + bias_ref[0]  # (TB, 1)
    z = jax.nn.sigmoid(logit)                                 # (TB, 1) f32
    # z*a + (1-z)*b  ==  b + z*(a-b)
    o_ref[...] = (b + z * (a - b)).astype(o_ref.dtype)


def fuse_forward(vec_a, vec_b, weight, bias):
    """vec_a, vec_b: (B, D); weight: (1, 2*D); bias: (1,)."""
    B, D = vec_a.shape
    assert vec_b.shape == (B, D)
    assert weight.shape == (1, 2 * D)

    out_dtype = jnp.result_type(vec_a.dtype, vec_b.dtype)
    itemsize = jnp.dtype(out_dtype).itemsize

    # Lane-dense padding of the feature dim so stores are full-vreg unmasked.
    Dp = _round_up(D, 128)

    # Batch tile: 3 streams (a, b, out) x 2 pipeline buffers must fit well
    # inside the smallest default scoped-VMEM budget (v5e: 16 MiB).
    vmem_budget = 12 * 1024 * 1024
    per_row_bytes = 3 * 2 * Dp * itemsize
    tb = max(8, min(1024, (vmem_budget // per_row_bytes) // 8 * 8))
    tb = min(tb, _round_up(B, 8))
    Bp = _round_up(B, tb)

    # Split the Linear weight so the concat is fused away; keep weights as
    # lane-dense (1, Dp) rows in f32 (tiny, streamed once per tile).
    w_a = weight[:, :D].astype(jnp.float32)
    w_b = weight[:, D:].astype(jnp.float32)
    if Dp != D:
        w_a = jnp.pad(w_a, ((0, 0), (0, Dp - D)))
        w_b = jnp.pad(w_b, ((0, 0), (0, Dp - D)))

    a = vec_a.astype(out_dtype)
    b = vec_b.astype(out_dtype)
    if (Bp, Dp) != (B, D):
        a = jnp.pad(a, ((0, Bp - B), (0, Dp - D)))
        b = jnp.pad(b, ((0, Bp - B), (0, Dp - D)))

    bias_f32 = bias.reshape((1,)).astype(jnp.float32)

    tile = lambda i: (i, 0)
    const = lambda i: (0, 0)

    cost = pl.CostEstimate(
        flops=8 * B * D,
        transcendentals=B,
        bytes_accessed=3 * B * D * itemsize + 2 * D * 4,
    )

    out = pl.pallas_call(
        fuse_kernel,
        out_shape=jax.ShapeDtypeStruct((Bp, Dp), out_dtype),
        grid=(Bp // tb,),
        in_specs=[
            pl.BlockSpec((tb, Dp), tile),                        # vec_a tile
            pl.BlockSpec((tb, Dp), tile),                        # vec_b tile
            pl.BlockSpec((1, Dp), const),                        # w_a row
            pl.BlockSpec((1, Dp), const),                        # w_b row
            pl.BlockSpec(memory_space=pltpu.MemorySpace.SMEM),   # bias scalar
        ],
        out_specs=pl.BlockSpec((tb, Dp), tile),
        compiler_params=pltpu.CompilerParams(
            dimension_semantics=("parallel",),
        ),
        cost_estimate=cost,
    )(a, b, w_a, w_b, bias_f32)

    if (Bp, Dp) != (B, D):
        out = out[:B, :D]
    return out


def init_params(key, vec_len):
    """Deterministic init matching nn.Linear(2*vec_len, 1) with xavier_normal_ weight."""
    k_w, k_b = jax.random.split(key)
    fan_in, fan_out = 2 * vec_len, 1
    std = math.sqrt(2.0 / (fan_in + fan_out))            # xavier normal
    weight = std * jax.random.normal(k_w, (1, 2 * vec_len), dtype=jnp.float32)
    bound = 1.0 / math.sqrt(fan_in)                      # PyTorch default bias init
    bias = jax.random.uniform(k_b, (1,), minval=-bound, maxval=bound,
                              dtype=jnp.float32)
    return weight, bias


def fuse_reference(vec_a, vec_b, weight, bias):
    """Pure-JAX reference mirroring the PyTorch forward."""
    cat = jnp.concatenate([vec_a, vec_b], axis=1)        # (B, 2D)
    z = jax.nn.sigmoid(cat @ weight.T + bias)            # (B, 1)
    return z * vec_a + (1.0 - z) * vec_b


if __name__ == "__main__":
    B, VEC_LEN = 8, 32

    key = jax.random.PRNGKey(0)
    k_a, k_b, k_p = jax.random.split(key, 3)
    vec_a = jax.random.normal(k_a, (B, VEC_LEN), dtype=jnp.float32)
    vec_b = jax.random.normal(k_b, (B, VEC_LEN), dtype=jnp.float32)
    weight, bias = init_params(k_p, VEC_LEN)

    out = fuse_forward(vec_a, vec_b, weight, bias)
    out = jax.block_until_ready(out)

    ref = fuse_reference(vec_a, vec_b, weight, bias)
    assert out.shape == (B, VEC_LEN)
    assert jnp.allclose(out, ref, atol=1e-5, rtol=1e-5), "mismatch vs reference"

    print("KERNEL_OK")
</pallas_src>

<mosaic_0001>
module attributes {stable_mosaic.version = 11 : i64} {
  func.func @fuse_kernel(%arg0: i32, %arg1: memref<8x128xf32, #tpu.memory_space<vmem>>, %arg2: memref<8x128xf32, #tpu.memory_space<vmem>>, %arg3: memref<1x128xf32, #tpu.memory_space<vmem>>, %arg4: memref<1x128xf32, #tpu.memory_space<vmem>>, %arg5: memref<1xf32, #tpu.memory_space<smem>>, %arg6: memref<8x128xf32, #tpu.memory_space<vmem>>) attributes {dimension_semantics = [#tpu.dimension_semantics<parallel>], iteration_bounds = array<i64: 1>, scalar_prefetch = 0 : i64, scratch_operands = 0 : i64, tpu.core_type = #tpu.core_type<tc>, window_params = [{transform_indices = @transform_0, window_bounds = array<i64: 8, 128>}, {transform_indices = @transform_1, window_bounds = array<i64: 8, 128>}, {pipeline_mode = #tpu.pipeline_mode<synchronous>, transform_indices = @transform_2, window_bounds = array<i64: 1, 128>}, {pipeline_mode = #tpu.pipeline_mode<synchronous>, transform_indices = @transform_3, window_bounds = array<i64: 1, 128>}, {transform_indices = @transform_4, window_bounds = array<i64: 1>}, {transform_indices = @transform_5, window_bounds = array<i64: 8, 128>}]} {
    %c0 = arith.constant 0 : index
    %c0_0 = arith.constant 0 : index
    %0 = vector.load %arg1[%c0, %c0_0] : memref<8x128xf32, #tpu.memory_space<vmem>>, vector<8x128xf32>
    %c0_1 = arith.constant 0 : index
    %c0_2 = arith.constant 0 : index
    %1 = vector.load %arg2[%c0_1, %c0_2] : memref<8x128xf32, #tpu.memory_space<vmem>>, vector<8x128xf32>
    %c0_3 = arith.constant 0 : index
    %c0_4 = arith.constant 0 : index
    %2 = vector.load %arg3[%c0_3, %c0_4] : memref<1x128xf32, #tpu.memory_space<vmem>>, vector<1x128xf32>
    %3 = vector.broadcast %2 : vector<1x128xf32> to vector<8x128xf32>
    %4 = arith.mulf %0, %3 : vector<8x128xf32>
    %c0_5 = arith.constant 0 : index
    %c0_6 = arith.constant 0 : index
    %5 = vector.load %arg4[%c0_5, %c0_6] : memref<1x128xf32, #tpu.memory_space<vmem>>, vector<1x128xf32>
    %6 = vector.broadcast %5 : vector<1x128xf32> to vector<8x128xf32>
    %7 = arith.mulf %1, %6 : vector<8x128xf32>
    %8 = arith.addf %4, %7 : vector<8x128xf32>
    %cst = arith.constant dense<0.000000e+00> : vector<8xf32>
    %9 = vector.multi_reduction <add>, %8, %cst [1] : vector<8x128xf32> to vector<8xf32>
    %10 = vector.shape_cast %9 : vector<8xf32> to vector<8x1xf32>
    %c0_7 = arith.constant 0 : index
    %11 = memref.load %arg5[%c0_7] : memref<1xf32, #tpu.memory_space<smem>>
    %12 = vector.broadcast %11 : f32 to vector<8x1xf32>
    %13 = arith.addf %10, %12 : vector<8x1xf32>
    %14 = arith.negf %13 : vector<8x1xf32>
    %15 = math.exp %14 : vector<8x1xf32>
    %cst_8 = arith.constant 1.000000e+00 : f32
    %16 = vector.broadcast %cst_8 : f32 to vector<8x1xf32>
    %17 = arith.addf %16, %15 : vector<8x1xf32>
    %18 = arith.divf %16, %17 : vector<8x1xf32>
    %19 = arith.subf %0, %1 : vector<8x128xf32>
    %20 = vector.broadcast %18 : vector<8x1xf32> to vector<8x128xf32>
    %21 = arith.mulf %20, %19 : vector<8x128xf32>
    %22 = arith.addf %1, %21 : vector<8x128xf32>
    %c0_9 = arith.constant 0 : index
    %c0_10 = arith.constant 0 : index
    %23 = vector.load %arg6[%c0_9, %c0_10] : memref<8x128xf32, #tpu.memory_space<vmem>>, vector<8x128xf32>
    tpu.vector_store %arg6[%c0_9, %c0_10], %22 {strides = array<i32>} : memref<8x128xf32, #tpu.memory_space<vmem>>, vector<8x128xf32>,
    return
  }
  func.func @transform_0(%arg0: i32) -> (i32, i32) {
    %c0_i32 = arith.constant 0 : i32
    %c0_i32_0 = arith.constant 0 : i32
    return %arg0, %c0_i32 : i32, i32
  }
  func.func @transform_1(%arg0: i32) -> (i32, i32) {
    %c0_i32 = arith.constant 0 : i32
    %c0_i32_0 = arith.constant 0 : i32
    return %arg0, %c0_i32 : i32, i32
  }
  func.func @transform_2(%arg0: i32) -> (i32, i32) {
    %c0_i32 = arith.constant 0 : i32
    %c0_i32_0 = arith.constant 0 : i32
    %c0_i32_1 = arith.constant 0 : i32
    return %c0_i32, %c0_i32_0 : i32, i32
  }
  func.func @transform_3(%arg0: i32) -> (i32, i32) {
    %c0_i32 = arith.constant 0 : i32
    %c0_i32_0 = arith.constant 0 : i32
    %c0_i32_1 = arith.constant 0 : i32
    return %c0_i32, %c0_i32_0 : i32, i32
  }
  func.func @transform_4(%arg0: i32) -> i32 {
    %c0_i32 = arith.constant 0 : i32
    %c0_i32_0 = arith.constant 0 : i32
    return %c0_i32 : i32
  }
  func.func @transform_5(%arg0: i32) -> (i32, i32) {
    %c0_i32 = arith.constant 0 : i32
    %c0_i32_0 = arith.constant 0 : i32
    return %arg0, %c0_i32 : i32, i32
  }
}

</mosaic_0001>

<llo_original>
// kernel: tpu_custom_call.1
$region0: #{tpu_custom_call.1}
  #allocation0 [shape = 'u32[]', space=smem, size = 0x4, offset = 0x4, fixed_abs, tag = 'smem constant byte address 0x4 - core index']
  #allocation1 [shape = 'u32[144,128]{1,0:T(1,128)}', space=vmem, size = 0x12000, scoped, tag = 'internal scratch']
  #allocation2 [shape = 'f32[1]{0:T(128)S(6)}', space=smem, size = 0x200, scoped, tag = 'scoped memory for tpu_custom_call.1']
  %s0 = inlined_call_operand.hbm [shape: f32[8,128], index: 0, kind: input, shape index: {}]
  %s1 = inlined_call_operand.hbm [shape: f32[8,128], index: 1, kind: input, shape index: {}]
  %s2 = inlined_call_operand.vmem [shape: f32[1,128], index: 2, kind: input, shape index: {}]
  %s3 = inlined_call_operand.vmem [shape: f32[1,128], index: 3, kind: input, shape index: {}]
  %s4 = inlined_call_operand.<no memory space> [shape: f32[1], index: 4, kind: input, shape index: {}]
  %s5 = inlined_call_operand.hbm [shape: f32[8,128], index: 5, kind: output, shape index: {}]
  %s6 = sld [smem:[#allocation0]]
  $region38: #{tpu_custom_call.1} parent=0
    _
  %s8 = ssub.s32 1, %s6
  %s9 = scalar_select 0, %s8, %s6
  %10 = sst [smem:[#allocation2]] %s4
  $region1: #{tpu_custom_call.1} parent=0
    #allocation3 [shape = 'u8[4096]{0}', space=vmem, size = 0x1000, scoped, tag = 'input window, operand 0, single buffered']
    #allocation4 [shape = 's32[1]{0}', space=sflag, size = 0x4, scoped, tag = 'scoped memory for tpu_custom_call.1']
    #allocation5 [shape = 's32[1]{0}', space=sflag, size = 0x4, scoped, tag = 'scoped memory for tpu_custom_call.1']
    #allocation6 [shape = 'u8[4096]{0}', space=vmem, size = 0x1000, scoped, tag = 'input window, operand 1, single buffered']
    #allocation7 [shape = 's32[1]{0}', space=sflag, size = 0x4, scoped, tag = 'scoped memory for tpu_custom_call.1']
    #allocation8 [shape = 'u8[4096]{0}', space=vmem, size = 0x1000, scoped, tag = 'output window, operand 0, single buffered']
    %11 = vsyncpa [#allocation4], 0
    %12 = vsyncpa [#allocation7], 0
    %13 = vsyncpa [#allocation5], 0
    // Predicated region
    $region2: #{tpu_custom_call.1} parent=1 // pred_check
      _
    $region3: #{tpu_custom_call.1} parent=1 // pred_check_branch
      %15 = sbr.rel (0) target = $region5
    $region4: #{tpu_custom_call.1} parent=1 // pred_region
      %s17 = ssub.s32 128, 128
      %18 = vsyncadd [#allocation4], %s17
      %s20 = sshll.u32 [#allocation3], 4
      %s21 = int_to_ptr.vmem [resolvable:$true] %s20
      %23 = dma.hbm_to_vmem [thread:$0]  %s0, 128, %s21, [#allocation4]
    $region5: #{tpu_custom_call.1} parent=1 // pred_fallthru
      _
    // Predicated region
    $region6: #{tpu_custom_call.1} parent=1 // pred_check
      _
    $region7: #{tpu_custom_call.1} parent=1 // pred_check_branch
      %25 = sbr.rel (0) target = $region9
    $region8: #{tpu_custom_call.1} parent=1 // pred_region
      %s27 = ssub.s32 128, 128
      %28 = vsyncadd [#allocation7], %s27
      %s30 = sshll.u32 [#allocation6], 4
      %s31 = int_to_ptr.vmem [resolvable:$true] %s30
      %33 = dma.hbm_to_vmem [thread:$0]  %s1, 128, %s31, [#allocation7]
    $region9: #{tpu_custom_call.1} parent=1 // pred_fallthru
      _
    // Predicated region
    $region10: #{tpu_custom_call.1} parent=1 // pred_check
      _
    $region11: #{tpu_custom_call.1} parent=1 // pred_check_branch
      %35 = sbr.rel (0) target = $region13
    $region12: #{tpu_custom_call.1} parent=1 // pred_region
      _
    $region13: #{tpu_custom_call.1} parent=1 // pred_fallthru
      _
    // Predicated region
    $region14: #{tpu_custom_call.1} parent=1 // pred_check
      _
    $region15: #{tpu_custom_call.1} parent=1 // pred_check_branch
      %37 = sbr.rel (0) target = $region17
    $region16: #{tpu_custom_call.1} parent=1 // pred_region
      _
    $region17: #{tpu_custom_call.1} parent=1 // pred_fallthru
      _
    // Predicated region
    $region18: #{tpu_custom_call.1} parent=1 // pred_check
      _
    $region19: #{tpu_custom_call.1} parent=1 // pred_check_branch
      %39 = sbr.rel (0) target = $region21
    $region20: #{tpu_custom_call.1} parent=1 // pred_region
      _
    $region21: #{tpu_custom_call.1} parent=1 // pred_fallthru
      _
    // Predicated region
    $region22: #{tpu_custom_call.1} parent=1 // pred_check
      _
    $region23: #{tpu_custom_call.1} parent=1 // pred_check_branch
      %41 = sbr.rel (0) target = $region25
    $region24: #{tpu_custom_call.1} parent=1 // pred_region
      %42 = dma.done [#allocation4], 128
    $region25: #{tpu_custom_call.1} parent=1 // pred_fallthru
      _
    // Predicated region
    $region26: #{tpu_custom_call.1} parent=1 // pred_check
      _
    $region27: #{tpu_custom_call.1} parent=1 // pred_check_branch
      %44 = sbr.rel (0) target = $region29
    $region28: #{tpu_custom_call.1} parent=1 // pred_region
      %45 = dma.done [#allocation7], 128
    $region29: #{tpu_custom_call.1} parent=1 // pred_fallthru
      _
    %v46 = vld [vmem:[#allocation3] sm:$0xff]
    %v47 = vld [vmem:[#allocation6] sm:$0xff]
    %v48 = vld [vmem:[%s2] sm:$0x1]
    %v50 = vlaneseq
    %v51 = vshrl.u32 %v50, 7
    %v52 = vsub.s32 0, %v51
    %v53 = vrot.slane %v48, %v52
    %v55 = vmul.f32 %v46, %v53
    %v56 = vld [vmem:[%s3] sm:$0x1]
    %v58 = vlaneseq
    %v59 = vshrl.u32 %v58, 7
    %v60 = vsub.s32 0, %v59
    %v61 = vrot.slane %v56, %v60
    %v63 = vmul.f32 %v47, %v61
    %v64 = vadd.f32 %v55, %v63
    %65 = vadd.xlane.f32.xlu0 %v64
    %v66 = vpop.xlane.xlu0 %65
    %s67 = sld [smem:[#allocation2]]
    %v68 = vstv %s67
    %v69 = vadd.f32 %v66, %v68
    %v70 = vxor.u32 %v69, 2147483648
    %v71 = vmul.f32 %v70, 1.442695
    %v72 = vpow.pop %v71
    %v73 = vadd.f32 %v72, 1.0
    %v74 = vrcp.pop %v73
    %v75 = vmul.f32 1.0, %v74
    %v76 = vsub.f32 %v46, %v47
    %v77 = vmul.f32 %v75, %v76
    %v78 = vadd.f32 %v47, %v77
    %79 = vst [vmem:[#allocation8] sm:$0xff] %v78
    // Predicated region
    $region30: #{tpu_custom_call.1} parent=1 // pred_check
      _
    $region31: #{tpu_custom_call.1} parent=1 // pred_check_branch
      %81 = sbr.rel (0) target = $region33
    $region32: #{tpu_custom_call.1} parent=1 // pred_region
      %s83 = ssub.s32 128, 128
      %84 = vsyncadd [#allocation5], %s83
      %s86 = sshll.u32 [#allocation8], 4
      %s87 = int_to_ptr.vmem [resolvable:$true] %s86
      %89 = dma.vmem_to_hbm [thread:$0]  %s87, 128, %s5, [#allocation5]
    $region33: #{tpu_custom_call.1} parent=1 // pred_fallthru
      _
    // Predicated region
    $region34: #{tpu_custom_call.1} parent=1 // pred_check
      _
    $region35: #{tpu_custom_call.1} parent=1 // pred_check_branch
      %91 = sbr.rel (0) target = $region37
    $region36: #{tpu_custom_call.1} parent=1 // pred_region
      %92 = dma.done [#allocation5], 128
    $region37: #{tpu_custom_call.1} parent=1 // pred_fallthru
      _
    %93 = vsyncpa [#allocation4], 1
    %94 = vsyncpa [#allocation7], 1
    %95 = vsyncpa [#allocation5], 1

</llo_original>
